<compile_context>
chip_gen: v7x
topology: tpu7x:2x2x1
jax: 0.10.0
libtpu: 0.0.40
codegen_flags: <defaults>
</compile_context>

<pallas_src>
import functools
import math

import jax
import jax.numpy as jnp
from jax.experimental import pallas as pl
from jax.experimental.pallas import tpu as pltpu

LANE = 128
_MIN_TILE_ROWS = 32      # covers int8 (32) / bf16 (16) / f32 (8) sublane minimums
_MAX_TILE_ROWS = 2048


def _focal_loss_kernel(logits_ref, target_ref, out_ref, *, n_classes, gamma,
                       alpha, acc_rows):
    # logits_ref: (C, R, 128) native dtype; target_ref: (R, 128) int8/int32
    # out_ref:    (acc_rows, 128) f32 accumulator, resident across grid axis 2
    @pl.when(pl.program_id(2) == 0)
    def _init():
        out_ref[...] = jnp.zeros_like(out_ref)

    t = target_ref[...].astype(jnp.int32)                      # (R, 128)

    # Pass 1: running max over the (small, statically unrolled) class axis.
    m = logits_ref[0].astype(jnp.float32)
    for c in range(1, n_classes):
        m = jnp.maximum(m, logits_ref[c].astype(jnp.float32))

    # Pass 2: reload each plane from the ref (O(1) live temporaries), accumulate
    # sum-exp and gather the target-class shifted logit / exp / alpha with a
    # single mask per class.
    need_pt = gamma != 0.0
    s = jnp.zeros_like(m)
    sel_sc = jnp.zeros_like(m)
    sel_e = jnp.zeros_like(m) if need_pt else None
    at = jnp.zeros_like(m) if alpha is not None else None
    for c in range(n_classes):
        sc = logits_ref[c].astype(jnp.float32) - m
        e = jnp.exp(sc)
        s = s + e
        mask = t == c
        sel_sc = jnp.where(mask, sc, sel_sc)
        if need_pt:
            sel_e = jnp.where(mask, e, sel_e)
        if alpha is not None:
            at = jnp.where(mask, jnp.float32(alpha[c]), at)

    logpt = sel_sc - jnp.log(s)
    if alpha is not None:
        logpt = logpt * at

    if not need_pt:
        loss = -logpt
    else:
        pt = sel_e / s                      # == exp(pre-alpha logpt); no 2nd exp
        base = 1.0 - pt
        g = float(gamma)
        if g.is_integer() and g > 0:
            focal = base
            for _ in range(int(g) - 1):
                focal = focal * base
        else:
            focal = jnp.power(base, jnp.float32(g))
        loss = -focal * logpt

    # Padding sentinel -1 (covers the partial / out-of-bounds logits blocks)
    # contributes exactly zero; also shields against NaN/Inf in garbage rows.
    loss = jnp.where(t >= 0, loss, 0.0)

    r = loss.shape[0]
    if acc_rows == 8:
        # Sublane-aligned vadds only; cross-sublane reduce happens in wrapper.
        out_ref[...] += jnp.sum(loss.reshape(r // 8, 8, LANE), axis=0)
    else:
        out_ref[...] += jnp.sum(loss, axis=0, keepdims=True)


def _normalize_alpha(alpha, n_classes):
    if alpha is None:
        return None
    if isinstance(alpha, (int, float)) and not isinstance(alpha, bool):
        if n_classes != 2:
            raise ValueError(
                "scalar alpha expands to [alpha, 1-alpha] (PyTorch FocalLoss "
                f"behavior) and is only valid for 2 classes; got C={n_classes}")
        alpha = (float(alpha), 1.0 - float(alpha))
    alpha = tuple(float(a) for a in alpha)
    if len(alpha) != n_classes:
        raise ValueError(f"alpha must have {n_classes} entries, got {len(alpha)}")
    return alpha


def focal_loss(logits, target, gamma=0.0, alpha=None, size_average=True):
    """Matches FocalLoss.forward: logits (N, C, H, W) or (M, C); integer target."""
    if logits.ndim == 2:
        # TODO(synk): a class-minor kernel variant would avoid this full HBM
        # transpose copy for the 2-D path.
        x3 = jnp.transpose(logits)[None]                        # (1, C, M)
        t2 = target.reshape(1, -1)
    else:
        n0, c0 = logits.shape[0], logits.shape[1]
        hw0 = math.prod(logits.shape[2:])
        x3 = logits.reshape(n0, c0, hw0)
        t2 = target.reshape(n0, hw0)

    N, C, HW = x3.shape
    alpha_t = _normalize_alpha(alpha, C)

    # ---- spatial layout: rows of 128 lanes --------------------------------
    rows = -(-HW // LANE)
    if rows * LANE != HW:
        # TODO(synk): a (C, tile_hw) class-on-sublanes block variant would avoid
        # this copy when H*W is not a multiple of 128; pad minimally here.
        x3 = jnp.pad(x3, ((0, 0), (0, 0), (0, rows * LANE - HW)))
    x4 = x3.reshape(N, C, rows, LANE)          # free bitcast when no pad happened

    # ---- target wire format: int8 sentinel -1 when classes fit ------------
    tgt_dtype = jnp.int8 if C <= 127 else jnp.int32
    t2 = t2.astype(tgt_dtype)

    # ---- tile sizing: fill VMEM, temporaries included ----------------------
    try:
        vmem_cap = int(pltpu.get_tpu_info().vmem_capacity_bytes)
    except Exception:
        vmem_cap = 64 * 1024 * 1024            # conservative (v7x physical)
    vmem_limit = int(min(64 * 1024 * 1024, (vmem_cap * 3) // 4))
    budget = (vmem_limit * 2) // 3
    # double-buffered inputs + ~10 live f32 (tile_rows, 128) temporaries
    bytes_per_row = (2 * (C * x4.dtype.itemsize + jnp.dtype(tgt_dtype).itemsize)
                     + 10 * 4) * LANE
    max_tile_rows = max(_MIN_TILE_ROWS,
                        min(_MAX_TILE_ROWS, (budget // bytes_per_row) // 32 * 32))
    if N == 1 and rows > 2 * _MIN_TILE_ROWS:
        # Keep >= 2 row blocks so the spatial axis can be sharded across the
        # two v7x TensorCores when the batch axis gives no parallelism.
        half = -(-(-(-rows // 2)) // 32) * 32
        max_tile_rows = min(max_tile_rows, half)

    tile_rows = rows if rows <= max_tile_rows else max_tile_rows
    n_row_blocks = -(-rows // tile_rows)

    P = 2 if (N == 1 and n_row_blocks >= 2) else 1
    inner = -(-n_row_blocks // P)
    rows_grid = P * inner * tile_rows
    max_row_block = n_row_blocks - 1

    # Pad ONLY the (cheap) target to the full grid extent with -1: the logits
    # are never copied; their trailing partial/clamped blocks are masked out.
    if rows_grid * LANE != HW:
        t2 = jnp.pad(t2, ((0, 0), (0, rows_grid * LANE - HW)), constant_values=-1)
    t3 = t2.reshape(N, rows_grid, LANE)

    acc_rows = 8 if tile_rows % 8 == 0 else 1

    kernel = functools.partial(_focal_loss_kernel, n_classes=C,
                               gamma=float(gamma), alpha=alpha_t,
                               acc_rows=acc_rows)

    def logits_idx(n, p, h):
        # Clamp so a fully out-of-range block never occurs (extra grid steps
        # re-read the last real block; their targets are all -1 -> zero loss).
        return (n, 0, jnp.minimum(p * inner + h, max_row_block), 0)

    def target_idx(n, p, h):
        return (n, p * inner + h, 0)

    partials = pl.pallas_call(
        kernel,
        out_shape=jax.ShapeDtypeStruct((N, P, acc_rows, LANE), jnp.float32),
        grid=(N, P, inner),
        in_specs=[
            pl.BlockSpec((None, C, tile_rows, LANE), logits_idx),
            pl.BlockSpec((None, tile_rows, LANE), target_idx),
        ],
        out_specs=pl.BlockSpec((None, None, acc_rows, LANE),
                               lambda n, p, h: (n, p, 0, 0)),
        compiler_params=pltpu.CompilerParams(
            dimension_semantics=("parallel", "parallel", "arbitrary"),
            vmem_limit_bytes=vmem_limit,
        ),
    )(x4, t3)

    total = jnp.sum(partials)
    if size_average:
        return total / (N * HW)
    return total


def _reference_focal_loss(logits, target, gamma=0.0, alpha=None, size_average=True):
    # Pure-JAX replica of the PyTorch FocalLoss.forward.
    if logits.ndim > 2:
        n0, c0 = logits.shape[0], logits.shape[1]
        x = logits.reshape(n0, c0, -1).transpose(0, 2, 1).reshape(-1, c0)
    else:
        x = logits
    x = x.astype(jnp.float32)
    t = target.reshape(-1)
    logpt = jax.nn.log_softmax(x, axis=1)
    logpt = jnp.take_along_axis(logpt, t[:, None], axis=1)[:, 0]
    pt = jnp.exp(logpt)
    if alpha is not None:
        if isinstance(alpha, (int, float)):
            alpha = [float(alpha), 1.0 - float(alpha)]
        at = jnp.asarray(alpha, dtype=jnp.float32)[t]
        logpt = logpt * at
    loss = -((1.0 - pt) ** gamma) * logpt
    return loss.mean() if size_average else loss.sum()


if __name__ == "__main__":
    key = jax.random.PRNGKey(0)
    k1, k2, k3, k4 = jax.random.split(key, 4)

    # Default FocalLoss(): gamma=0, alpha=None, size_average=True.
    N, C, H, W = 2, 4, 16, 16
    logits = jax.random.normal(k1, (N, C, H, W), dtype=jnp.float32)
    target = jax.random.randint(k2, (N, H, W), 0, C, dtype=jnp.int32)
    loss = jax.block_until_ready(focal_loss(logits, target))
    ref = _reference_focal_loss(logits, target)
    assert jnp.allclose(loss, ref, atol=1e-5, rtol=1e-5), (loss, ref)

    # gamma / alpha variant (exercises the focal weight and the alpha gather).
    g, a = 2.0, [0.1, 0.2, 0.3, 0.4]
    loss2 = jax.block_until_ready(focal_loss(logits, target, gamma=g, alpha=a))
    ref2 = _reference_focal_loss(logits, target, gamma=g, alpha=a)
    assert jnp.allclose(loss2, ref2, atol=1e-5, rtol=1e-5), (loss2, ref2)

    # bf16 logits, N==1 (spatial 'parallel' split), non-divisible row count:
    # exercises the partial / out-of-bounds logits block masked by -1 targets.
    N3, C3, H3, W3 = 1, 2, 96, 128
    logits3 = jax.random.normal(k3, (N3, C3, H3, W3), dtype=jnp.bfloat16)
    target3 = jax.random.randint(k4, (N3, H3, W3), 0, C3, dtype=jnp.int32)
    loss3 = jax.block_until_ready(focal_loss(logits3, target3, gamma=2.0))
    ref3 = _reference_focal_loss(logits3, target3, gamma=2.0)
    assert jnp.allclose(loss3, ref3, atol=1e-4, rtol=1e-4), (loss3, ref3)

    print("KERNEL_OK")
</pallas_src>

<mosaic_0001>
module attributes {stable_mosaic.version = 11 : i64} {
  func.func @_focal_loss_kernel(%arg0: i32, %arg1: i32, %arg2: i32, %arg3: memref<1x4x2x128xf32, #tpu.memory_space<vmem>>, %arg4: memref<1x2x128xi8, #tpu.memory_space<vmem>>, %arg5: memref<1x1x1x128xf32, #tpu.memory_space<vmem>>) attributes {dimension_semantics = [#tpu.dimension_semantics<parallel>, #tpu.dimension_semantics<parallel>, #tpu.dimension_semantics<arbitrary>], iteration_bounds = array<i64: 2, 1, 1>, scalar_prefetch = 0 : i64, scratch_operands = 0 : i64, tpu.core_type = #tpu.core_type<tc>, window_params = [{transform_indices = @transform_0, window_bounds = array<i64: 1, 4, 2, 128>}, {transform_indices = @transform_1, window_bounds = array<i64: 1, 2, 128>}, {transform_indices = @transform_2, window_bounds = array<i64: 1, 1, 1, 128>}]} {
    %c0_i32 = arith.constant 0 : i32
    %0 = arith.cmpi eq, %arg2, %c0_i32 : i32
    %1 = arith.extui %0 : i1 to i32
    %c0_i32_0 = arith.constant 0 : i32
    %2 = arith.cmpi ne, %1, %c0_i32_0 : i32
    scf.if %2 {
      %cst_46 = arith.constant 0.000000e+00 : f32
      %67 = vector.broadcast %cst_46 : f32 to vector<1x128xf32>
      %c0_47 = arith.constant 0 : index
      %c0_48 = arith.constant 0 : index
      %c0_49 = arith.constant 0 : index
      %c0_50 = arith.constant 0 : index
      %68 = vector.load %arg5[%c0_47, %c0_48, %c0_49, %c0_50] : memref<1x1x1x128xf32, #tpu.memory_space<vmem>>, vector<1x1x1x128xf32>
      %69 = vector.shape_cast %68 : vector<1x1x1x128xf32> to vector<1x128xf32>
      %70 = vector.shape_cast %67 : vector<1x128xf32> to vector<1x1x1x128xf32>
      tpu.vector_store %arg5[%c0_47, %c0_48, %c0_49, %c0_50], %70 {strides = array<i32>} : memref<1x1x1x128xf32, #tpu.memory_space<vmem>>, vector<1x1x1x128xf32>,
    } else {
    }
    %c0 = arith.constant 0 : index
    %c0_1 = arith.constant 0 : index
    %c0_2 = arith.constant 0 : index
    %3 = vector.load %arg4[%c0, %c0_1, %c0_2] : memref<1x2x128xi8, #tpu.memory_space<vmem>>, vector<1x2x128xi8>
    %4 = vector.shape_cast %3 : vector<1x2x128xi8> to vector<2x128xi8>
    %5 = arith.extsi %4 : vector<2x128xi8> to vector<2x128xi32>
    %c0_3 = arith.constant 0 : index
    %c0_4 = arith.constant 0 : index
    %c0_5 = arith.constant 0 : index
    %c0_6 = arith.constant 0 : index
    %6 = vector.load %arg3[%c0_3, %c0_4, %c0_5, %c0_6] : memref<1x4x2x128xf32, #tpu.memory_space<vmem>>, vector<1x1x2x128xf32>
    %7 = vector.shape_cast %6 : vector<1x1x2x128xf32> to vector<2x128xf32>
    %c0_7 = arith.constant 0 : index
    %c1 = arith.constant 1 : index
    %c0_8 = arith.constant 0 : index
    %c0_9 = arith.constant 0 : index
    %8 = vector.load %arg3[%c0_7, %c1, %c0_8, %c0_9] : memref<1x4x2x128xf32, #tpu.memory_space<vmem>>, vector<1x1x2x128xf32>
    %9 = vector.shape_cast %8 : vector<1x1x2x128xf32> to vector<2x128xf32>
    %10 = arith.maximumf %7, %9 : vector<2x128xf32>
    %c0_10 = arith.constant 0 : index
    %c2 = arith.constant 2 : index
    %c0_11 = arith.constant 0 : index
    %c0_12 = arith.constant 0 : index
    %11 = vector.load %arg3[%c0_10, %c2, %c0_11, %c0_12] : memref<1x4x2x128xf32, #tpu.memory_space<vmem>>, vector<1x1x2x128xf32>
    %12 = vector.shape_cast %11 : vector<1x1x2x128xf32> to vector<2x128xf32>
    %13 = arith.maximumf %10, %12 : vector<2x128xf32>
    %c0_13 = arith.constant 0 : index
    %c3 = arith.constant 3 : index
    %c0_14 = arith.constant 0 : index
    %c0_15 = arith.constant 0 : index
    %14 = vector.load %arg3[%c0_13, %c3, %c0_14, %c0_15] : memref<1x4x2x128xf32, #tpu.memory_space<vmem>>, vector<1x1x2x128xf32>
    %15 = vector.shape_cast %14 : vector<1x1x2x128xf32> to vector<2x128xf32>
    %16 = arith.maximumf %13, %15 : vector<2x128xf32>
    %cst = arith.constant 0.000000e+00 : f32
    %17 = vector.broadcast %cst : f32 to vector<2x128xf32>
    %cst_16 = arith.constant 0.000000e+00 : f32
    %18 = vector.broadcast %cst_16 : f32 to vector<2x128xf32>
    %c0_17 = arith.constant 0 : index
    %c0_18 = arith.constant 0 : index
    %c0_19 = arith.constant 0 : index
    %c0_20 = arith.constant 0 : index
    %19 = vector.load %arg3[%c0_17, %c0_18, %c0_19, %c0_20] : memref<1x4x2x128xf32, #tpu.memory_space<vmem>>, vector<1x1x2x128xf32>
    %20 = vector.shape_cast %19 : vector<1x1x2x128xf32> to vector<2x128xf32>
    %21 = arith.subf %20, %16 : vector<2x128xf32>
    %22 = math.exp %21 : vector<2x128xf32>
    %23 = arith.addf %17, %22 : vector<2x128xf32>
    %c0_i32_21 = arith.constant 0 : i32
    %24 = vector.broadcast %c0_i32_21 : i32 to vector<2x128xi32>
    %25 = arith.cmpi eq, %5, %24 : vector<2x128xi32>
    %26 = arith.select %25, %21, %18 : vector<2x128xi1>, vector<2x128xf32>
    %c0_22 = arith.constant 0 : index
    %c1_23 = arith.constant 1 : index
    %c0_24 = arith.constant 0 : index
    %c0_25 = arith.constant 0 : index
    %27 = vector.load %arg3[%c0_22, %c1_23, %c0_24, %c0_25] : memref<1x4x2x128xf32, #tpu.memory_space<vmem>>, vector<1x1x2x128xf32>
    %28 = vector.shape_cast %27 : vector<1x1x2x128xf32> to vector<2x128xf32>
    %29 = arith.subf %28, %16 : vector<2x128xf32>
    %30 = math.exp %29 : vector<2x128xf32>
    %31 = arith.addf %23, %30 : vector<2x128xf32>
    %c1_i32 = arith.constant 1 : i32
    %32 = vector.broadcast %c1_i32 : i32 to vector<2x128xi32>
    %33 = arith.cmpi eq, %5, %32 : vector<2x128xi32>
    %34 = arith.select %33, %29, %26 : vector<2x128xi1>, vector<2x128xf32>
    %c0_26 = arith.constant 0 : index
    %c2_27 = arith.constant 2 : index
    %c0_28 = arith.constant 0 : index
    %c0_29 = arith.constant 0 : index
    %35 = vector.load %arg3[%c0_26, %c2_27, %c0_28, %c0_29] : memref<1x4x2x128xf32, #tpu.memory_space<vmem>>, vector<1x1x2x128xf32>
    %36 = vector.shape_cast %35 : vector<1x1x2x128xf32> to vector<2x128xf32>
    %37 = arith.subf %36, %16 : vector<2x128xf32>
    %38 = math.exp %37 : vector<2x128xf32>
    %39 = arith.addf %31, %38 : vector<2x128xf32>
    %c2_i32 = arith.constant 2 : i32
    %40 = vector.broadcast %c2_i32 : i32 to vector<2x128xi32>
    %41 = arith.cmpi eq, %5, %40 : vector<2x128xi32>
    %42 = arith.select %41, %37, %34 : vector<2x128xi1>, vector<2x128xf32>
    %c0_30 = arith.constant 0 : index
    %c3_31 = arith.constant 3 : index
    %c0_32 = arith.constant 0 : index
    %c0_33 = arith.constant 0 : index
    %43 = vector.load %arg3[%c0_30, %c3_31, %c0_32, %c0_33] : memref<1x4x2x128xf32, #tpu.memory_space<vmem>>, vector<1x1x2x128xf32>
    %44 = vector.shape_cast %43 : vector<1x1x2x128xf32> to vector<2x128xf32>
    %45 = arith.subf %44, %16 : vector<2x128xf32>
    %46 = math.exp %45 : vector<2x128xf32>
    %47 = arith.addf %39, %46 : vector<2x128xf32>
    %c3_i32 = arith.constant 3 : i32
    %48 = vector.broadcast %c3_i32 : i32 to vector<2x128xi32>
    %49 = arith.cmpi eq, %5, %48 : vector<2x128xi32>
    %50 = arith.select %49, %45, %42 : vector<2x128xi1>, vector<2x128xf32>
    %51 = math.log %47 : vector<2x128xf32>
    %52 = arith.subf %50, %51 : vector<2x128xf32>
    %cst_34 = arith.constant 0.000000e+00 : f32
    %53 = vector.broadcast %cst_34 : f32 to vector<2x128xf32>
    %54 = arith.subf %53, %52 : vector<2x128xf32>
    %c0_i32_35 = arith.constant 0 : i32
    %55 = vector.broadcast %c0_i32_35 : i32 to vector<2x128xi32>
    %56 = arith.cmpi sge, %5, %55 : vector<2x128xi32>
    %cst_36 = arith.constant 0.000000e+00 : f32
    %57 = vector.broadcast %cst_36 : f32 to vector<2x128xf32>
    %58 = arith.select %56, %54, %57 : vector<2x128xi1>, vector<2x128xf32>
    %c0_37 = arith.constant 0 : index
    %c0_38 = arith.constant 0 : index
    %c0_39 = arith.constant 0 : index
    %c0_40 = arith.constant 0 : index
    %59 = vector.load %arg5[%c0_37, %c0_38, %c0_39, %c0_40] : memref<1x1x1x128xf32, #tpu.memory_space<vmem>>, vector<1x1x1x128xf32>
    %60 = vector.shape_cast %59 : vector<1x1x1x128xf32> to vector<1x128xf32>
    %cst_41 = arith.constant dense<0.000000e+00> : vector<128xf32>
    %61 = vector.multi_reduction <add>, %58, %cst_41 [0] : vector<2x128xf32> to vector<128xf32>
    %62 = vector.shape_cast %61 : vector<128xf32> to vector<1x128xf32>
    %63 = arith.addf %60, %62 : vector<1x128xf32>
    %c0_42 = arith.constant 0 : index
    %c0_43 = arith.constant 0 : index
    %c0_44 = arith.constant 0 : index
    %c0_45 = arith.constant 0 : index
    %64 = vector.load %arg5[%c0_42, %c0_43, %c0_44, %c0_45] : memref<1x1x1x128xf32, #tpu.memory_space<vmem>>, vector<1x1x1x128xf32>
    %65 = vector.shape_cast %64 : vector<1x1x1x128xf32> to vector<1x128xf32>
    %66 = vector.shape_cast %63 : vector<1x128xf32> to vector<1x1x1x128xf32>
    tpu.vector_store %arg5[%c0_42, %c0_43, %c0_44, %c0_45], %66 {strides = array<i32>} : memref<1x1x1x128xf32, #tpu.memory_space<vmem>>, vector<1x1x1x128xf32>,
    return
  }
  func.func @transform_0(%arg0: i32, %arg1: i32, %arg2: i32) -> (i32, i32, i32, i32) {
    %c1_i32 = arith.constant 1 : i32
    %0 = arith.muli %arg1, %c1_i32 : i32
    %1 = arith.addi %0, %arg2 : i32
    %c0_i32 = arith.constant 0 : i32
    %2 = arith.minsi %1, %c0_i32 : i32
    %c0_i32_0 = arith.constant 0 : i32
    %c0_i32_1 = arith.constant 0 : i32
    %c0_i32_2 = arith.constant 0 : i32
    return %arg0, %c0_i32_0, %2, %c0_i32_1 : i32, i32, i32, i32
  }
  func.func @transform_1(%arg0: i32, %arg1: i32, %arg2: i32) -> (i32, i32, i32) {
    %c1_i32 = arith.constant 1 : i32
    %0 = arith.muli %arg1, %c1_i32 : i32
    %1 = arith.addi %0, %arg2 : i32
    %c0_i32 = arith.constant 0 : i32
    %c0_i32_0 = arith.constant 0 : i32
    return %arg0, %1, %c0_i32 : i32, i32, i32
  }
  func.func @transform_2(%arg0: i32, %arg1: i32, %arg2: i32) -> (i32, i32, i32, i32) {
    %c0_i32 = arith.constant 0 : i32
    %c0_i32_0 = arith.constant 0 : i32
    %c0_i32_1 = arith.constant 0 : i32
    return %arg0, %arg1, %c0_i32, %c0_i32_0 : i32, i32, i32, i32
  }
}

</mosaic_0001>

<llo_original>
// kernel: tpu_custom_call.1
$region0: #{tpu_custom_call.1}
  #allocation0 [shape = 'u32[]', space=smem, size = 0x4, offset = 0x4, fixed_abs, tag = 'smem constant byte address 0x4 - core index']
  #allocation1 [shape = 'u32[144,128]{1,0:T(1,128)}', space=vmem, size = 0x12000, scoped, tag = 'internal scratch']
  %s0 = inlined_call_operand.hbm [shape: f32[2,4,2,128], index: 0, kind: input, shape index: {}]
  %s1 = inlined_call_operand.vmem [shape: s8[2,2,128], index: 1, kind: input, shape index: {}]
  %s2 = inlined_call_operand.hbm [shape: f32[2,1,1,128], index: 2, kind: output, shape index: {}]
  %s3 = sld [smem:[#allocation0]]
  $region49: #{tpu_custom_call.1} parent=0
    _
  %s5 = ssub.s32 1, %s3
  %s6 = scalar_select 0, %s5, %s3
  $region1: #{tpu_custom_call.1} parent=0
    #allocation2 [shape = 'u8[8192]{0}', space=vmem, size = 0x2000, scoped, tag = 'input window, operand 0']
    #allocation3 [shape = 's32[2]{0}', space=sflag, size = 0x8, scoped, tag = 'scoped memory for tpu_custom_call.1']
    #allocation4 [shape = 's32[2]{0}', space=sflag, size = 0x8, scoped, tag = 'scoped memory for tpu_custom_call.1']
    #allocation5 [shape = 'u8[1024]{0}', space=vmem, size = 0x400, scoped, tag = 'output window, operand 0']
    %7 = vsyncpa [#allocation3], 0
    %s8 = scalar_lea.sflag [#allocation3], 1
    %9 = vsyncpa %s8, 0
    %10 = vsyncpa [#allocation4], 0
    %s11 = scalar_lea.sflag [#allocation4], 1
    %12 = vsyncpa %s11, 0
    loop: start=0, step=1, limit=4
    $region2: #{tpu_custom_call.1} parent=1 // loop_pre_header
      _
    $region3: #{tpu_custom_call.1} parent=1 // loop_header
      %s14 = sphi 0, %s18
      %p15 = scmp.ge.s32.totalorder %s14, 4
      %s21 = sphi 0, %s40
      %s22 = sphi 0, %s36
      %s23 = sphi 0, %s32
      %s24 = sphi 0, %s21
      %s25 = sphi 0, %s22
      %s26 = sphi 0, %s23
      %s27 = sphi 0, %s24
      %s28 = sphi 0, %s25
      %s29 = sphi 0, %s26
      %s51 = sphi 0, %s53
      %s54 = sphi 0, %s51
      %s55 = sphi 0, %s54
      %s71 = sphi 0, %s55
      %s81 = sphi 0, %s83
      %s84 = sphi 0, %s81
      %s85 = sphi 0, %s84
      %s101 = sphi 0, %s85
      %s109 = sphi 0, %s111
      %s112 = sphi 0, %s109
      %s113 = sphi 0, %s112
      %s129 = sphi 0, %s113
    $region4: #{tpu_custom_call.1} parent=1 // loop_header_branch
      %17 = sbr.rel (%p15) target = $region8
    $region5: #{tpu_custom_call.1} parent=1 // loop_body
      %s19 = ssub.s32 %s14, 1
      %s20 = ssub.s32 %s14, 2
      %s30 = sadd.s32 1, %s23
      %p31 = scmp.ge.s32.totalorder %s30, 1
      %s32 = scalar_select %p31, 0, %s30
      %s33 = sadd.s32 1, %s22
      %s34 = scalar_select %p31, %s33, %s22
      %p35 = scmp.ge.s32.totalorder %s34, 1
      %s36 = scalar_select %p35, 0, %s34
      %s37 = sadd.s32 1, %s21
      %s38 = scalar_select %p35, %s37, %s21
      %p39 = scmp.ge.s32.totalorder %s38, 2
      %s40 = scalar_select %p39, 0, %s38
      %s41 = sadd.s32 %s22, %s23
      %p42 = scmp.lt.s32.totalorder %s41, 0
      %s43 = scalar_select %p42, %s41, 0
      %s44 = sadd.s32 %s36, %s32
      %p45 = scmp.lt.s32.totalorder %s44, 0
      %s46 = scalar_select %p45, %s44, 0
      %s47 = ssub.s32 %s21, %s40
      %s48 = ssub.s32 %s43, %s46
      %s49 = sor.u32 %s47, %s48
      %p50 = scmp.eq.s32.totalorder %s49, 0
      %s52 = sadd.s32 %s51, 1
      %s53 = scalar_select %p50, %s51, %s52
      %p56 = pneg %p50
      %p57 = scmp.eq.s32.totalorder %s14, 1
      %p58 = por %p56, %p57
      %p59 = scmp.ne.s32.totalorder %s51, %s54
      %p60 = scmp.eq.s32.totalorder %s14, 0
      %p61 = por %p59, %p60
      %p62 = scmp.ne.s32.totalorder %s51, %s54
      %p63 = scmp.eq.s32.totalorder %s19, 1
      %p64 = por %p62, %p63
      %p65 = scmp.ne.s32.totalorder %s54, %s55
      %p66 = scmp.eq.s32.totalorder %s19, 0
      %p67 = por %p65, %p66
      %p68 = scmp.ne.s32.totalorder %s54, %s55
      %p69 = scmp.eq.s32.totalorder %s20, 1
      %p70 = por %p68, %p69
      %p72 = scmp.ne.s32.totalorder %s55, %s71
      %p73 = scmp.eq.s32.totalorder %s20, 0
      %p74 = por %p72, %p73
      %s75 = sadd.s32 %s22, %s23
      %s76 = sadd.s32 %s36, %s32
      %s77 = ssub.s32 %s21, %s40
      %s78 = ssub.s32 %s75, %s76
      %s79 = sor.u32 %s77, %s78
      %p80 = scmp.eq.s32.totalorder %s79, 0
      %s82 = sadd.s32 %s81, 1
      %s83 = scalar_select %p80, %s81, %s82
      %p86 = pneg %p80
      %p87 = scmp.eq.s32.totalorder %s14, 1
      %p88 = por %p86, %p87
      %p89 = scmp.ne.s32.totalorder %s81, %s84
      %p90 = scmp.eq.s32.totalorder %s14, 0
      %p91 = por %p89, %p90
      %p92 = scmp.ne.s32.totalorder %s81, %s84
      %p93 = scmp.eq.s32.totalorder %s19, 1
      %p94 = por %p92, %p93
      %p95 = scmp.ne.s32.totalorder %s84, %s85
      %p96 = scmp.eq.s32.totalorder %s19, 0
      %p97 = por %p95, %p96
      %p98 = scmp.ne.s32.totalorder %s84, %s85
      %p99 = scmp.eq.s32.totalorder %s20, 1
      %p100 = por %p98, %p99
      %p102 = scmp.ne.s32.totalorder %s85, %s101
      %p103 = scmp.eq.s32.totalorder %s20, 0
      %p104 = por %p102, %p103
      %s105 = ssub.s32 %s21, %s40
      %s106 = ssub.s32 %s22, %s36
      %s107 = sor.u32 %s105, %s106
      %p108 = scmp.eq.s32.totalorder %s107, 0
      %s110 = sadd.s32 %s109, 1
      %s111 = scalar_select %p108, %s109, %s110
      %p114 = pneg %p108
      %p115 = scmp.eq.s32.totalorder %s14, 1
      %p116 = por %p114, %p115
      %p117 = scmp.ne.s32.totalorder %s109, %s112
      %p118 = scmp.eq.s32.totalorder %s14, 0
      %p119 = por %p117, %p118
      %p120 = scmp.ne.s32.totalorder %s109, %s112
      %p121 = scmp.eq.s32.totalorder %s19, 1
      %p122 = por %p120, %p121
      %p123 = scmp.ne.s32.totalorder %s112, %s113
      %p124 = scmp.eq.s32.totalorder %s19, 0
      %p125 = por %p123, %p124
      %p126 = scmp.ne.s32.totalorder %s112, %s113
      %p127 = scmp.eq.s32.totalorder %s20, 1
      %p128 = por %p126, %p127
      %p130 = scmp.ne.s32.totalorder %s113, %s129
      %p131 = scmp.eq.s32.totalorder %s20, 0
      %p132 = por %p130, %p131
      %p133 = scmp.le.s32.totalorder 1, %s14
      %p134 = scmp.lt.s32.totalorder %s14, 3
      %p135 = pnand %p133, %p134
      %p136 = pneg %p135
      // Predicated region
      $region9: #{tpu_custom_call.1} parent=5 // pred_check
        _
      $region10: #{tpu_custom_call.1} parent=5 // pred_check_branch
        %138 = sbr.rel (%p135) target = $region12
      $region11: #{tpu_custom_call.1} parent=5 // pred_region
        %s139 = ssub.s32 %s14, 1
      $region12: #{tpu_custom_call.1} parent=5 // pred_fallthru
        _
      %p140 = scmp.lt.s32.totalorder %s14, 2
      // Predicated region
      $region13: #{tpu_custom_call.1} parent=5 // pred_check
        %p141 = pneg %p140
      $region14: #{tpu_custom_call.1} parent=5 // pred_check_branch
        %143 = sbr.rel (%p141) target = $region16
      $region15: #{tpu_custom_call.1} parent=5 // pred_region
        // Predicated region
        $region17: #{tpu_custom_call.1} parent=15 // pred_check
          %p144 = pneg %p61
        $region18: #{tpu_custom_call.1} parent=15 // pred_check_branch
          %146 = sbr.rel (%p144) target = $region20
        $region19: #{tpu_custom_call.1} parent=15 // pred_region
          %s147 = sand.u32 %s51, 1
          %s148 = scalar_lea.sflag [#allocation3], %s147
          %s149 = sand.u32 %s51, 1
          %s150 = smul.addr %s149, 8
          %s151 = scalar_lea.vmem [#allocation2], %s150
          %s152 = sadd.s32 %s22, %s23
          %p153 = scmp.lt.s32.totalorder %s152, 0
          %s154 = scalar_select %p153, %s152, 0
          %s156 = ssub.s32 128, 128
          %157 = vsyncadd %s148, %s156
          %s158 = smul.addr %s21, 4
          %s159 = sadd.s32 %s154, %s158
          %s160 = smul.addr %s159, 32
          %s161 = scalar_lea.hbm %s0, %s160
          %s162 = sshll.u32 %s151, 4
          %s163 = int_to_ptr.vmem [resolvable:$true] %s162
          %168 = dma.hbm_to_vmem [thread:$0]  %s161, 128, %s163, %s148, 32, 32, 2
        $region20: #{tpu_custom_call.1} parent=15 // pred_fallthru
          _
        // Predicated region
        $region21: #{tpu_custom_call.1} parent=15 // pred_check
          %p169 = pneg %p91
        $region22: #{tpu_custom_call.1} parent=15 // pred_check_branch
          %171 = sbr.rel (%p169) target = $region24
        $region23: #{tpu_custom_call.1} parent=15 // pred_region
          %s172 = sadd.s32 %s22, %s23
          %p173 = scmp.lt.s32.totalorder %s21, 1
          %s174 = scalar_select %p173, %s21, 1
          %p175 = scmp.lt.s32.totalorder %s172, 0
          %s176 = scalar_select %p175, %s172, 0
          %s177 = sadd.s32 %s176, %s174
          %s178 = scalar_lea.vmem %s1, %s177
          %s179 = sadd.s32 %s22, %s23
        $region24: #{tpu_custom_call.1} parent=15 // pred_fallthru
          _
      $region16: #{tpu_custom_call.1} parent=5 // pred_fallthru
        _
      %p180 = scmp.le.s32.totalorder 1, %s14
      %p181 = scmp.lt.s32.totalorder %s14, 3
      %p182 = pnand %p180, %p181
      %p183 = pneg %p182
      // Predicated region
      $region25: #{tpu_custom_call.1} parent=5 // pred_check
        _
      $region26: #{tpu_custom_call.1} parent=5 // pred_check_branch
        %185 = sbr.rel (%p182) target = $region28
      $region27: #{tpu_custom_call.1} parent=5 // pred_region
        %s186 = ssub.s32 %s14, 1
        %s187 = sand.u32 %s54, 1
        %s188 = scalar_lea.sflag [#allocation3], %s187
        %s189 = sand.u32 %s54, 1
        %s190 = smul.addr %s189, 8
        %s191 = scalar_lea.vmem [#allocation2], %s190
        // Predicated region
        $region29: #{tpu_custom_call.1} parent=27 // pred_check
          %p192 = pneg %p67
        $region30: #{tpu_custom_call.1} parent=27 // pred_check_branch
          %194 = sbr.rel (%p192) target = $region32
        $region31: #{tpu_custom_call.1} parent=27 // pred_region
          %195 = dma.done %s188, 128
        $region32: #{tpu_custom_call.1} parent=27 // pred_fallthru
          _
        %s196 = sand.u32 %s54, 1
        %s197 = scalar_lea.sflag [#allocation3], %s196
        %s198 = sand.u32 %s54, 1
        %s199 = smul.addr %s198, 8
        %s200 = scalar_lea.vmem [#allocation2], %s199
        %p201 = pneg %p67
        %p202 = pneg %p64
        %s203 = sadd.s32 %s25, %s26
        %p204 = scmp.lt.s32.totalorder %s24, 1
        %s205 = scalar_select %p204, %s24, 1
        %p206 = scmp.lt.s32.totalorder %s203, 0
        %s207 = scalar_select %p206, %s203, 0
        %s208 = sadd.s32 %s207, %s205
        %s209 = scalar_lea.vmem %s1, %s208
        %p210 = pneg %p97
        %p211 = pneg %p94
        %p212 = pneg %p125
        %p213 = pneg %p122
        %s214 = sand.u32 %s112, 1
        %s215 = scalar_lea.sflag [#allocation4], %s214
        %s216 = sand.u32 %s112, 1
        %s217 = scalar_lea.vmem [#allocation5], %s216
        %s218 = sadd.s32 %s25, %s26
        %p219 = scmp.lt.s32.totalorder %s218, 0
        %s220 = scalar_select %p219, %s218, 0
        %s221 = sadd.s32 %s25, %s26
        %p222 = scmp.lt.s32.totalorder %s24, 1
        %s223 = scalar_select %p222, %s24, 1
        %p224 = scmp.lt.s32.totalorder %s221, 0
        %s225 = scalar_select %p224, %s221, 0
        %s226 = sadd.s32 %s225, %s223
        %s227 = scalar_lea.vmem %s1, %s226
        %s228 = sadd.s32 %s25, %s26
        %p229 = scmp.eq.s32.totalorder %s26, 0
        // Predicated region
        $region33: #{tpu_custom_call.1} parent=27 // pred_check
          %p230 = pneg %p229
        $region34: #{tpu_custom_call.1} parent=27 // pred_check_branch
          %232 = sbr.rel (%p230) target = $region36
        $region35: #{tpu_custom_call.1} parent=27 // pred_region
          %233 = vst [vmem:[%s217] sm:$0x1] 0.0
        $region36: #{tpu_custom_call.1} parent=27 // pred_fallthru
          _
        %v234 = vld [vmem:[%s227] sm:$0x1]
        %v235 = vunpack.c.0.s8 %v234
        %v236 = vld [vmem:[%s191] sm:$0x3]
        %s237 = scalar_lea.vmem %s191, 2 [#allocation2]
        %v238 = vld [vmem:[%s237] sm:$0x3]
        %v239 = vmax.f32 %v236, %v238
        %s240 = scalar_lea.vmem %s191, 4 [#allocation2]
        %v241 = vld [vmem:[%s240] sm:$0x3]
        %v242 = vmax.f32 %v239, %v241
        %s243 = scalar_lea.vmem %s191, 6 [#allocation2]
        %v244 = vld [vmem:[%s243] sm:$0x3]
        %v245 = vmax.f32 %v242, %v244
        %v246 = vsub.f32 %v236, %v245
        %v247 = vmul.f32 %v246, 1.442695
        %v248 = vpow.pop %v247
        %v249 = vadd.f32 %v248, 0.0
        %vm250 = vcmp.eq.s32.totalorder %v235, 0
        %v251 = vsel %vm250, %v246, 0.0
        %v252 = vsub.f32 %v238, %v245
        %v253 = vmul.f32 %v252, 1.442695
        %v254 = vpow.pop %v253
        %v255 = vadd.f32 %v249, %v254
        %vm256 = vcmp.eq.s32.totalorder %v235, 1
        %v257 = vsel %vm256, %v252, %v251
        %v258 = vsub.f32 %v241, %v245
        %v259 = vmul.f32 %v258, 1.442695
        %v260 = vpow.pop %v259
        %v261 = vadd.f32 %v255, %v260
        %vm262 = vcmp.eq.s32.totalorder %v235, 2
        %v263 = vsel %vm262, %v258, %v257
        %v264 = vsub.f32 %v244, %v245
        %v265 = vmul.f32 %v264, 1.442695
        %v266 = vpow.pop %v265
        %v267 = vadd.f32 %v261, %v266
        %vm268 = vcmp.eq.s32.totalorder %v235, 3
        %v269 = vsel %vm268, %v264, %v263
        %v270 = vlog2.pop %v267
        %v271 = vmul.f32 %v270, 0.6931472
        %v272 = vsub.f32 %v269, %v271
        %v273 = vsub.f32 0.0, %v272
        %vm274 = vcmp.ge.s32.totalorder %v235, 0
        %v275 = vsel %vm274, %v273, 0.0
        %v276 = vld [vmem:[%s217] sm:$0x1]
        %vm277 = vcmask 1041408
        %v278 = vsel %vm277, %v275, 0.0
        %v279 = vrot.slane %v278, 4
        %v280 = vadd.f32 %v278, %v279
        %v281 = vrot.slane %v280, 2
        %v282 = vadd.f32 %v280, %v281
        %v283 = vrot.slane %v282, 1
        %v284 = vadd.f32 %v282, %v283
        %v285 = vadd.f32 %v276, %v284
        %286 = vst [vmem:[%s217] sm:$0x1] %v285
        %s287 = sand.u32 %s112, 1
        %s288 = scalar_lea.sflag [#allocation4], %s287
        %s289 = sand.u32 %s112, 1
        %s290 = scalar_lea.vmem [#allocation5], %s289
        // Predicated region
        $region37: #{tpu_custom_call.1} parent=27 // pred_check
          %p291 = pneg %p122
        $region38: #{tpu_custom_call.1} parent=27 // pred_check_branch
          %293 = sbr.rel (%p291) target = $region40
        $region39: #{tpu_custom_call.1} parent=27 // pred_region
          %s295 = ssub.s32 16, 16
          %296 = vsyncadd %s288, %s295
          %s297 = sadd.s32 %s25, %s24
          %s298 = smul.addr %s297, 16
          %s299 = scalar_lea.hbm %s2, %s298
          %s301 = sshll.u32 %s290, 4
          %s302 = int_to_ptr.vmem [resolvable:$true] %s301
          %304 = dma.vmem_to_hbm [thread:$0]  %s302, 16, %s299, %s288
        $region40: #{tpu_custom_call.1} parent=27 // pred_fallthru
          _
      $region28: #{tpu_custom_call.1} parent=5 // pred_fallthru
        _
      %p305 = scmp.le.s32.totalorder 2, %s14
      // Predicated region
      $region41: #{tpu_custom_call.1} parent=5 // pred_check
        %p306 = pneg %p305
      $region42: #{tpu_custom_call.1} parent=5 // pred_check_branch
        %308 = sbr.rel (%p306) target = $region44
      $region43: #{tpu_custom_call.1} parent=5 // pred_region
        %s309 = ssub.s32 %s14, 2
        // Predicated region
        $region45: #{tpu_custom_call.1} parent=43 // pred_check
          %p310 = pneg %p128
        $region46: #{tpu_custom_call.1} parent=43 // pred_check_branch
          %312 = sbr.rel (%p310) target = $region48
        $region47: #{tpu_custom_call.1} parent=43 // pred_region
          %s313 = sand.u32 %s113, 1
          %s314 = scalar_lea.sflag [#allocation4], %s313
          %s315 = sand.u32 %s113, 1
          %s316 = scalar_lea.vmem [#allocation5], %s315
          %317 = dma.done %s314, 16
        $region48: #{tpu_custom_call.1} parent=43 // pred_fallthru
          _
      $region44: #{tpu_custom_call.1} parent=5 // pred_fallthru
        _
    $region6: #{tpu_custom_call.1} parent=1 // loop_footer
      %s18 = sadd.s32 1, %s14
    $region7: #{tpu_custom_call.1} parent=1 // loop_footer_branch
      %13 = sbr.rel target = $region3
    $region8: #{tpu_custom_call.1} parent=1 // loop_exit
      _
    %318 = vsyncpa [#allocation3], 1
    %s319 = scalar_lea.sflag [#allocation3], 1
    %320 = vsyncpa %s319, 1
    %321 = vsyncpa [#allocation4], 1
    %s322 = scalar_lea.sflag [#allocation4], 1
    %323 = vsyncpa %s322, 1

</llo_original>
